<compile_context>
chip_gen: v6e
topology: v6e:2x2x1
jax: 0.10.0
libtpu: 0.0.40
codegen_flags: <defaults>
</compile_context>

<pallas_src>
import functools

import jax
import jax.numpy as jnp
from jax.experimental import pallas as pl
from jax.experimental.pallas import tpu as pltpu


def _round_up(x: int, m: int) -> int:
    return ((x + m - 1) // m) * m


def _cdiv(a: int, b: int) -> int:
    return (a + b - 1) // b


def _apply_activation(v, activation: str, *, in_kernel: bool):
    # v is float32; transcendentals stay f32 (v5e VPU/EUP have no bf16).
    if activation == "relu":
        return jnp.maximum(v, 0.0)
    if activation == "silu":
        if in_kernel:
            # exp + approx reciprocal both run on the EUP -> no VALU divide.
            return v * pl.reciprocal(1.0 + jnp.exp(-v), approx=True)
        return v * jax.nn.sigmoid(v)
    if activation == "elu":
        return jnp.where(v > 0, v, jnp.expm1(jnp.minimum(v, 0.0)))
    if activation == "tanh":
        return jnp.tanh(v)
    if activation == "sigmoid":
        if in_kernel:
            return pl.reciprocal(1.0 + jnp.exp(-v), approx=True)
        return jax.nn.sigmoid(v)
    if activation == "sin":
        return jnp.sin(v)
    raise ValueError(f"Activation {activation} is not supported.")


# ---------------------------------------------------------------------------
# Pallas kernel: fused MLP over one batch tile, feature-major layout.
#   activations: (feat, TILE_B),  layer i:  res = W_i^T @ h + b_i
# ---------------------------------------------------------------------------
def _make_mlp_kernel(num_layers: int, activation: str, residual_flags: tuple):
    need_f32_chain = any(residual_flags)

    def kernel(*refs):
        # refs = (x_t, w0, b0, w1, b1, ..., w_{L-1}, b_{L-1}, out_t)
        x_ref = refs[0]
        o_ref = refs[-1]
        wb = refs[1:-1]

        h = x_ref[...]                                   # bf16 (in_dims, TILE_B)
        h_f32 = h.astype(jnp.float32) if need_f32_chain else None
        for i in range(num_layers):
            last = i == num_layers - 1
            w = wb[2 * i][...]                           # (feat_out_pad, feat_in_pad)
            b = wb[2 * i + 1][...]                       # f32 (feat_out_pad, 1)
            # MXU: (feat_out, feat_in) @ (feat_in, TILE_B) -> f32 accumulate.
            res = jnp.dot(w, h, preferred_element_type=jnp.float32) + b
            if not last:
                res = _apply_activation(res, activation, in_kernel=True)
            if residual_flags[i]:
                res = res + h_f32
            if last:
                o_ref[...] = res.astype(o_ref.dtype)     # (out_rows, TILE_B)
            else:
                # Next layer's MXU operand: bf16, except the final layer (its
                # weight is f32 and only out_rows<=8 rows) is fed f32 directly,
                # skipping a full-tile cast.
                h = res if i == num_layers - 2 else res.astype(jnp.bfloat16)
                if need_f32_chain:
                    h_f32 = res

    return kernel


# ---------------------------------------------------------------------------
# Python wrapper (parameter setup + pallas_call)
# ---------------------------------------------------------------------------
class ParamPaCMAPPallas:
    """JAX/Pallas re-implementation of ParamPaCMAP with the 'ANN' backbone."""

    def __init__(self, input_dims: int, output_dims: int, model_dict: dict,
                 key: jax.Array, max_tile_b: int = 4096):
        assert model_dict["backbone"] == "ANN"
        # TODO(synk): 'CNN' and 'embedding' backbones (and set_output_per_layer)
        # of ParamPaCMAP are not implemented here; only the default 'ANN'
        # backbone forward pass is a Pallas kernel.
        self.activation = model_dict.get("activation", "silu")
        self.residual = model_dict.get("residual", False)
        self.bias = model_dict.get("bias", True)
        self.max_tile_b = max(128, int(max_tile_b))

        layer_size = [input_dims] + list(model_dict["layer_size"]) + [output_dims]
        self.layer_size = layer_size
        self.num_layers = len(layer_size) - 1
        # Feature padding: input stays un-padded (K=input_dims matmul is fine and
        # avoids a 4x input DMA blow-up), hidden dims pad to 128, and the output
        # pads only to the 8-sublane minimum (it is stored transposed, so the
        # batch axis is the lane axis).
        self.padded_size = ([input_dims]
                            + [_round_up(d, 128) for d in layer_size[1:-1]]
                            + [_round_up(output_dims, 8)])
        # Residual is gated on the ORIGINAL (unpadded) dims, matching PyTorch.
        self.residual_flags = tuple(
            self.residual and layer_size[i] == layer_size[i + 1]
            for i in range(self.num_layers)
        )

        # Deterministic synthetic parameter init (stand-in for nn.Linear init).
        self.params = []          # unpadded f32 (W, b) for the pure-JAX reference
        self.padded_params = []   # transposed, zero-padded kernel params
        for i in range(self.num_layers):
            key, kw, kb = jax.random.split(key, 3)
            fan_in, fan_out = layer_size[i], layer_size[i + 1]
            pin, pout = self.padded_size[i], self.padded_size[i + 1]
            scale = 1.0 / jnp.sqrt(jnp.float32(fan_in))
            w = (jax.random.uniform(kw, (fan_in, fan_out), jnp.float32,
                                    minval=-1.0, maxval=1.0) * scale)
            if self.bias:
                b = (jax.random.uniform(kb, (fan_out,), jnp.float32,
                                        minval=-1.0, maxval=1.0) * scale)
            else:
                b = jnp.zeros((fan_out,), jnp.float32)
            self.params.append((w, b))

            # Store W^T (feat_out_pad, feat_in_pad); zero padding guarantees the
            # padded rows/cols never leak into the real output rows.
            wt = jnp.zeros((pout, pin), jnp.float32).at[:fan_out, :fan_in].set(w.T)
            bp = jnp.zeros((pout, 1), jnp.float32).at[:fan_out, 0].set(b)
            w_dtype = jnp.float32 if i == self.num_layers - 1 else jnp.bfloat16
            self.padded_params.append((wt.astype(w_dtype), bp))

    @functools.partial(jax.jit, static_argnums=0)
    def __call__(self, x: jax.Array) -> jax.Array:
        batch = x.shape[0]
        in_dims = self.layer_size[0]
        out_dims = self.layer_size[-1]
        out_rows = self.padded_size[-1]

        # Batch tiling: as few tiles as max_tile_b allows, sized so the last tile
        # is never mostly padding; tile_b is a multiple of 128 so the lane axis
        # of every activation / the output block is lane-dense.  >=2 steps lets
        # v7x's two TensorCores split the ("parallel",) batch axis.
        n_tiles = max(1, _cdiv(batch, self.max_tile_b))
        if n_tiles == 1 and batch >= 2048:
            n_tiles = 2
        tile_b = _round_up(_cdiv(batch, n_tiles), 128)
        padded_batch = n_tiles * tile_b

        # Single cheap host-side pass: cast to bf16, transpose to feature-major,
        # pad only the batch (lane) axis. No 32->128 feature padding.
        x_t = jnp.pad(x.astype(jnp.bfloat16).T,
                      ((0, 0), (0, padded_batch - batch)))

        kernel = _make_mlp_kernel(self.num_layers, self.activation,
                                  self.residual_flags)

        flat_params = []
        in_specs = [pl.BlockSpec((in_dims, tile_b), lambda i: (0, i))]
        for w, b in self.padded_params:
            flat_params.extend([w, b])
            # Weights/biases: constant index_map -> VMEM-resident across steps.
            in_specs.append(pl.BlockSpec(w.shape, lambda i: (0, 0)))
            in_specs.append(pl.BlockSpec(b.shape, lambda i: (0, 0)))

        out_t = pl.pallas_call(
            kernel,
            grid=(n_tiles,),
            out_shape=jax.ShapeDtypeStruct((out_rows, padded_batch), jnp.float32),
            in_specs=in_specs,
            out_specs=pl.BlockSpec((out_rows, tile_b), lambda i: (0, i)),
            compiler_params=pltpu.CompilerParams(
                dimension_semantics=("parallel",),
                vmem_limit_bytes=64 * 1024 * 1024),
        )(x_t, *flat_params)

        # Transposed output is only `out_rows` (=8) f32 sublanes per sample, so
        # this final slice/transpose touches ~32 B/sample instead of ~1 KiB.
        return out_t[:out_dims, :batch].T.astype(x.dtype)

    # Pure-JAX reference mirroring the kernel's numerics (bf16 MXU operands for
    # all but the last layer, f32 accumulate/epilogue, exact sigmoid for silu).
    def reference(self, x: jax.Array) -> jax.Array:
        L = self.num_layers
        op_bf16 = x.astype(jnp.bfloat16)
        prev_f32 = op_bf16.astype(jnp.float32)
        for i, (w, b) in enumerate(self.params):
            last = i == L - 1
            if last:
                lhs = prev_f32 if L > 1 else op_bf16.astype(jnp.float32)
                out = jnp.dot(lhs, w, preferred_element_type=jnp.float32) + b[None, :]
            else:
                lhs = op_bf16 if i == 0 else prev_f32.astype(jnp.bfloat16)
                out = jnp.dot(lhs, w.astype(jnp.bfloat16),
                              preferred_element_type=jnp.float32) + b[None, :]
                out = _apply_activation(out, self.activation, in_kernel=False)
            if self.residual_flags[i]:
                out = out + prev_f32
            prev_f32 = out
        return prev_f32.astype(x.dtype)


# ---------------------------------------------------------------------------
if __name__ == "__main__":
    key = jax.random.PRNGKey(0)
    key, k_param, k_x = jax.random.split(key, 3)

    # Small shapes consistent with ParamPaCMAP's ANN backbone:
    # input_dims=32, hidden layer_size=[64, 64], output_dims=2.
    input_dims = 32
    output_dims = 2
    model_dict = {
        "backbone": "ANN",
        "layer_size": [64, 64],
        "activation": "silu",
        "bias": True,
        "residual": False,
    }

    # Small max_tile_b here so the example exercises a multi-step batch grid
    # (production default max_tile_b=4096 for large PaCMAP batches).
    model = ParamPaCMAPPallas(input_dims, output_dims, model_dict, k_param,
                              max_tile_b=128)

    batch = 300  # non-multiple of the tile -> exercises batch padding + slicing
    x = jax.random.normal(k_x, (batch, input_dims), jnp.float32)

    out = jax.block_until_ready(model(x))

    ref = model.reference(x)
    assert out.shape == (batch, output_dims)
    # Tolerance leaves headroom for the EUP approx-reciprocal in the in-kernel
    # silu (<= ~1e-3 deviation from exact sigmoid).
    assert jnp.allclose(out, ref, atol=2e-2, rtol=2e-2), "mismatch vs reference"

    print("KERNEL_OK")
</pallas_src>

<mosaic_0001>
module attributes {stable_mosaic.version = 11 : i64} {
  func.func @kernel(%arg0: i32, %arg1: memref<32x128xbf16, #tpu.memory_space<vmem>>, %arg2: memref<128x32xbf16, #tpu.memory_space<vmem>>, %arg3: memref<128x1xf32, #tpu.memory_space<vmem>>, %arg4: memref<128x128xbf16, #tpu.memory_space<vmem>>, %arg5: memref<128x1xf32, #tpu.memory_space<vmem>>, %arg6: memref<8x128xf32, #tpu.memory_space<vmem>>, %arg7: memref<8x1xf32, #tpu.memory_space<vmem>>, %arg8: memref<8x128xf32, #tpu.memory_space<vmem>>) attributes {dimension_semantics = [#tpu.dimension_semantics<parallel>], iteration_bounds = array<i64: 3>, scalar_prefetch = 0 : i64, scratch_operands = 0 : i64, tpu.core_type = #tpu.core_type<tc>, window_params = [{transform_indices = @transform_0, window_bounds = array<i64: 32, 128>}, {pipeline_mode = #tpu.pipeline_mode<synchronous>, transform_indices = @transform_1, window_bounds = array<i64: 128, 32>}, {pipeline_mode = #tpu.pipeline_mode<synchronous>, transform_indices = @transform_2, window_bounds = array<i64: 128, 1>}, {pipeline_mode = #tpu.pipeline_mode<synchronous>, transform_indices = @transform_3, window_bounds = array<i64: 128, 128>}, {pipeline_mode = #tpu.pipeline_mode<synchronous>, transform_indices = @transform_4, window_bounds = array<i64: 128, 1>}, {pipeline_mode = #tpu.pipeline_mode<synchronous>, transform_indices = @transform_5, window_bounds = array<i64: 8, 128>}, {pipeline_mode = #tpu.pipeline_mode<synchronous>, transform_indices = @transform_6, window_bounds = array<i64: 8, 1>}, {transform_indices = @transform_7, window_bounds = array<i64: 8, 128>}]} {
    %c0 = arith.constant 0 : index
    %c0_0 = arith.constant 0 : index
    %0 = vector.load %arg1[%c0, %c0_0] : memref<32x128xbf16, #tpu.memory_space<vmem>>, vector<32x128xbf16>
    %c0_1 = arith.constant 0 : index
    %c0_2 = arith.constant 0 : index
    %1 = vector.load %arg2[%c0_1, %c0_2] : memref<128x32xbf16, #tpu.memory_space<vmem>>, vector<128x32xbf16>
    %c0_3 = arith.constant 0 : index
    %c0_4 = arith.constant 0 : index
    %2 = vector.load %arg3[%c0_3, %c0_4] : memref<128x1xf32, #tpu.memory_space<vmem>>, vector<128x1xf32>
    %cst = arith.constant dense<0.000000e+00> : vector<128x128xf32>
    %3 = tpu.matmul %1, %0, %cst {dimension_numbers = #tpu.dot_dimension_numbers<[1], [0], [0], [1], [0, 0, 1, 1], [], []>} : vector<128x32xbf16>, vector<32x128xbf16>, vector<128x128xf32> -> vector<128x128xf32>
    %4 = vector.broadcast %2 : vector<128x1xf32> to vector<128x128xf32>
    %5 = arith.addf %3, %4 : vector<128x128xf32>
    %cst_5 = arith.constant 0.000000e+00 : f32
    %6 = vector.broadcast %cst_5 : f32 to vector<128x128xf32>
    %7 = arith.subf %6, %5 : vector<128x128xf32>
    %8 = math.exp %7 : vector<128x128xf32>
    %cst_6 = arith.constant 1.000000e+00 : f32
    %9 = vector.broadcast %cst_6 : f32 to vector<128x128xf32>
    %10 = arith.addf %9, %8 : vector<128x128xf32>
    %11 = tpu.reciprocal %10 {approx = true} : vector<128x128xf32> -> vector<128x128xf32>
    %12 = arith.mulf %5, %11 : vector<128x128xf32>
    %13 = arith.truncf %12 : vector<128x128xf32> to vector<128x128xbf16>
    %c0_7 = arith.constant 0 : index
    %c0_8 = arith.constant 0 : index
    %14 = vector.load %arg4[%c0_7, %c0_8] : memref<128x128xbf16, #tpu.memory_space<vmem>>, vector<128x128xbf16>
    %c0_9 = arith.constant 0 : index
    %c0_10 = arith.constant 0 : index
    %15 = vector.load %arg5[%c0_9, %c0_10] : memref<128x1xf32, #tpu.memory_space<vmem>>, vector<128x1xf32>
    %cst_11 = arith.constant dense<0.000000e+00> : vector<128x128xf32>
    %16 = tpu.matmul %14, %13, %cst_11 {dimension_numbers = #tpu.dot_dimension_numbers<[1], [0], [0], [1], [0, 0, 1, 1], [], []>} : vector<128x128xbf16>, vector<128x128xbf16>, vector<128x128xf32> -> vector<128x128xf32>
    %17 = vector.broadcast %15 : vector<128x1xf32> to vector<128x128xf32>
    %18 = arith.addf %16, %17 : vector<128x128xf32>
    %cst_12 = arith.constant 0.000000e+00 : f32
    %19 = vector.broadcast %cst_12 : f32 to vector<128x128xf32>
    %20 = arith.subf %19, %18 : vector<128x128xf32>
    %21 = math.exp %20 : vector<128x128xf32>
    %cst_13 = arith.constant 1.000000e+00 : f32
    %22 = vector.broadcast %cst_13 : f32 to vector<128x128xf32>
    %23 = arith.addf %22, %21 : vector<128x128xf32>
    %24 = tpu.reciprocal %23 {approx = true} : vector<128x128xf32> -> vector<128x128xf32>
    %25 = arith.mulf %18, %24 : vector<128x128xf32>
    %c0_14 = arith.constant 0 : index
    %c0_15 = arith.constant 0 : index
    %26 = vector.load %arg6[%c0_14, %c0_15] : memref<8x128xf32, #tpu.memory_space<vmem>>, vector<8x128xf32>
    %c0_16 = arith.constant 0 : index
    %c0_17 = arith.constant 0 : index
    %27 = vector.load %arg7[%c0_16, %c0_17] : memref<8x1xf32, #tpu.memory_space<vmem>>, vector<8x1xf32>
    %cst_18 = arith.constant dense<0.000000e+00> : vector<8x128xf32>
    %28 = tpu.matmul %26, %25, %cst_18 {dimension_numbers = #tpu.dot_dimension_numbers<[1], [0], [0], [1], [0, 0, 1, 1], [], []>} : vector<8x128xf32>, vector<128x128xf32>, vector<8x128xf32> -> vector<8x128xf32>
    %29 = vector.broadcast %27 : vector<8x1xf32> to vector<8x128xf32>
    %30 = arith.addf %28, %29 : vector<8x128xf32>
    %c0_19 = arith.constant 0 : index
    %c0_20 = arith.constant 0 : index
    %31 = vector.load %arg8[%c0_19, %c0_20] : memref<8x128xf32, #tpu.memory_space<vmem>>, vector<8x128xf32>
    tpu.vector_store %arg8[%c0_19, %c0_20], %30 {strides = array<i32>} : memref<8x128xf32, #tpu.memory_space<vmem>>, vector<8x128xf32>,
    return
  }
  func.func @transform_0(%arg0: i32) -> (i32, i32) {
    %c0_i32 = arith.constant 0 : i32
    %c0_i32_0 = arith.constant 0 : i32
    return %c0_i32, %arg0 : i32, i32
  }
  func.func @transform_1(%arg0: i32) -> (i32, i32) {
    %c0_i32 = arith.constant 0 : i32
    %c0_i32_0 = arith.constant 0 : i32
    %c0_i32_1 = arith.constant 0 : i32
    return %c0_i32, %c0_i32_0 : i32, i32
  }
  func.func @transform_2(%arg0: i32) -> (i32, i32) {
    %c0_i32 = arith.constant 0 : i32
    %c0_i32_0 = arith.constant 0 : i32
    %c0_i32_1 = arith.constant 0 : i32
    return %c0_i32, %c0_i32_0 : i32, i32
  }
  func.func @transform_3(%arg0: i32) -> (i32, i32) {
    %c0_i32 = arith.constant 0 : i32
    %c0_i32_0 = arith.constant 0 : i32
    %c0_i32_1 = arith.constant 0 : i32
    return %c0_i32, %c0_i32_0 : i32, i32
  }
  func.func @transform_4(%arg0: i32) -> (i32, i32) {
    %c0_i32 = arith.constant 0 : i32
    %c0_i32_0 = arith.constant 0 : i32
    %c0_i32_1 = arith.constant 0 : i32
    return %c0_i32, %c0_i32_0 : i32, i32
  }
  func.func @transform_5(%arg0: i32) -> (i32, i32) {
    %c0_i32 = arith.constant 0 : i32
    %c0_i32_0 = arith.constant 0 : i32
    %c0_i32_1 = arith.constant 0 : i32
    return %c0_i32, %c0_i32_0 : i32, i32
  }
  func.func @transform_6(%arg0: i32) -> (i32, i32) {
    %c0_i32 = arith.constant 0 : i32
    %c0_i32_0 = arith.constant 0 : i32
    %c0_i32_1 = arith.constant 0 : i32
    return %c0_i32, %c0_i32_0 : i32, i32
  }
  func.func @transform_7(%arg0: i32) -> (i32, i32) {
    %c0_i32 = arith.constant 0 : i32
    %c0_i32_0 = arith.constant 0 : i32
    return %c0_i32, %arg0 : i32, i32
  }
}

</mosaic_0001>

<llo_original>
// kernel: a_call__.1
$region0: #{a_call__.1}
  #allocation0 [shape = 'u32[]', space=smem, size = 0x4, offset = 0x4, fixed_abs, tag = 'smem constant byte address 0x4 - core index']
  #allocation1 [shape = 'u32[144,128]{1,0:T(1,128)}', space=vmem, size = 0x12000, scoped, tag = 'internal scratch']
  %s0 = inlined_call_operand.vmem [shape: bf16[32,384], index: 0, kind: input, shape index: {}]
  %s1 = inlined_call_operand.hbm [shape: bf16[128,32], index: 1, kind: input, shape index: {}]
  %s2 = inlined_call_operand.hbm [shape: f32[128,1], index: 2, kind: input, shape index: {}]
  %s3 = inlined_call_operand.vmem [shape: bf16[128,128], index: 3, kind: input, shape index: {}]
  %s4 = inlined_call_operand.vmem [shape: f32[128,1], index: 4, kind: input, shape index: {}]
  %s5 = inlined_call_operand.vmem [shape: f32[8,128], index: 5, kind: input, shape index: {}]
  %s6 = inlined_call_operand.vmem [shape: f32[8,1], index: 6, kind: input, shape index: {}]
  %s7 = inlined_call_operand.vmem [shape: f32[8,384], index: 7, kind: output, shape index: {}]
  %s8 = sld [smem:[#allocation0]]
  $region110: #{a_call__.1} parent=0
    _
  %s10 = ssub.s32 1, %s8
  %s11 = scalar_select 0, %s10, %s8
  $region1: #{a_call__.1} parent=0
    #allocation2 [shape = 'u8[16384]{0}', space=vmem, size = 0x4000, scoped, tag = 'input window, operand 0']
    #allocation3 [shape = 'u8[32768]{0}', space=vmem, size = 0x8000, scoped, tag = 'input window, operand 1, single buffered']
    #allocation4 [shape = 's32[2]{0}', space=sflag, size = 0x8, scoped, tag = 'scoped memory for a_call__.1']
    #allocation5 [shape = 'u8[65536]{0}', space=vmem, size = 0x10000, scoped, tag = 'input window, operand 2, single buffered']
    #allocation6 [shape = 's32[1]{0}', space=sflag, size = 0x4, scoped, tag = 'scoped memory for a_call__.1']
    %12 = vsyncpa [#allocation4], 0
    %13 = vsyncpa [#allocation6], 0
    loop: start=0, step=1, limit=5
    $region2: #{a_call__.1} parent=1 // loop_pre_header
      _
    $region3: #{a_call__.1} parent=1 // loop_header
      %s15 = sphi 0, %s19
      %p16 = scmp.ge.s32.totalorder %s15, 5
      %s25 = sphi 0, %s27
      %s28 = sphi 0, %s25
      %s29 = sphi 0, %s28
      %s45 = sphi 0, %s29
      %s49 = sphi 0, %s49
      %s51 = sphi 0, %s49
      %s52 = sphi 0, %s51
      %s66 = sphi 0, %s52
      %s70 = sphi 0, %s70
      %s72 = sphi 0, %s70
      %s73 = sphi 0, %s72
      %s87 = sphi 0, %s73
      %s91 = sphi 0, %s91
      %s93 = sphi 0, %s91
      %s94 = sphi 0, %s93
      %s108 = sphi 0, %s94
      %s112 = sphi 0, %s112
      %s114 = sphi 0, %s112
      %s115 = sphi 0, %s114
      %s129 = sphi 0, %s115
      %s133 = sphi 0, %s133
      %s135 = sphi 0, %s133
      %s136 = sphi 0, %s135
      %s150 = sphi 0, %s136
      %s154 = sphi 0, %s154
      %s156 = sphi 0, %s154
      %s157 = sphi 0, %s156
      %s171 = sphi 0, %s157
      %s177 = sphi 0, %s179
      %s180 = sphi 0, %s177
      %s181 = sphi 0, %s180
      %s197 = sphi 0, %s181
    $region4: #{a_call__.1} parent=1 // loop_header_branch
      %18 = sbr.rel (%p16) target = $region8
    $region5: #{a_call__.1} parent=1 // loop_body
      %s20 = ssub.s32 %s15, 1
      %s21 = ssub.s32 %s15, 2
      %s22 = sadd.s32 %s15, 1
      %s23 = ssub.s32 %s15, %s22
      %p24 = scmp.eq.s32.totalorder %s23, 0
      %s26 = sadd.s32 %s25, 1
      %s27 = scalar_select %p24, %s25, %s26
      %p30 = pneg %p24
      %p31 = scmp.eq.s32.totalorder %s15, 2
      %p32 = por %p30, %p31
      %p33 = scmp.ne.s32.totalorder %s25, %s28
      %p34 = scmp.eq.s32.totalorder %s15, 0
      %p35 = por %p33, %p34
      %p36 = scmp.ne.s32.totalorder %s25, %s28
      %p37 = scmp.eq.s32.totalorder %s20, 2
      %p38 = por %p36, %p37
      %p39 = scmp.ne.s32.totalorder %s28, %s29
      %p40 = scmp.eq.s32.totalorder %s20, 0
      %p41 = por %p39, %p40
      %p42 = scmp.ne.s32.totalorder %s28, %s29
      %p43 = scmp.eq.s32.totalorder %s21, 2
      %p44 = por %p42, %p43
      %p46 = scmp.ne.s32.totalorder %s29, %s45
      %p47 = scmp.eq.s32.totalorder %s21, 0
      %p48 = por %p46, %p47
      %s50 = sadd.s32 %s49, 1
      %p53 = scmp.eq.s32.totalorder %s15, 2
      %p54 = scmp.ne.s32.totalorder %s49, %s51
      %p55 = scmp.eq.s32.totalorder %s15, 0
      %p56 = por %p54, %p55
      %p57 = scmp.ne.s32.totalorder %s49, %s51
      %p58 = scmp.eq.s32.totalorder %s20, 2
      %p59 = por %p57, %p58
      %p60 = scmp.ne.s32.totalorder %s51, %s52
      %p61 = scmp.eq.s32.totalorder %s20, 0
      %p62 = por %p60, %p61
      %p63 = scmp.ne.s32.totalorder %s51, %s52
      %p64 = scmp.eq.s32.totalorder %s21, 2
      %p65 = por %p63, %p64
      %p67 = scmp.ne.s32.totalorder %s52, %s66
      %p68 = scmp.eq.s32.totalorder %s21, 0
      %p69 = por %p67, %p68
      %s71 = sadd.s32 %s70, 1
      %p74 = scmp.eq.s32.totalorder %s15, 2
      %p75 = scmp.ne.s32.totalorder %s70, %s72
      %p76 = scmp.eq.s32.totalorder %s15, 0
      %p77 = por %p75, %p76
      %p78 = scmp.ne.s32.totalorder %s70, %s72
      %p79 = scmp.eq.s32.totalorder %s20, 2
      %p80 = por %p78, %p79
      %p81 = scmp.ne.s32.totalorder %s72, %s73
      %p82 = scmp.eq.s32.totalorder %s20, 0
      %p83 = por %p81, %p82
      %p84 = scmp.ne.s32.totalorder %s72, %s73
      %p85 = scmp.eq.s32.totalorder %s21, 2
      %p86 = por %p84, %p85
      %p88 = scmp.ne.s32.totalorder %s73, %s87
      %p89 = scmp.eq.s32.totalorder %s21, 0
      %p90 = por %p88, %p89
      %s92 = sadd.s32 %s91, 1
      %p95 = scmp.eq.s32.totalorder %s15, 2
      %p96 = scmp.ne.s32.totalorder %s91, %s93
      %p97 = scmp.eq.s32.totalorder %s15, 0
      %p98 = por %p96, %p97
      %p99 = scmp.ne.s32.totalorder %s91, %s93
      %p100 = scmp.eq.s32.totalorder %s20, 2
      %p101 = por %p99, %p100
      %p102 = scmp.ne.s32.totalorder %s93, %s94
      %p103 = scmp.eq.s32.totalorder %s20, 0
      %p104 = por %p102, %p103
      %p105 = scmp.ne.s32.totalorder %s93, %s94
      %p106 = scmp.eq.s32.totalorder %s21, 2
      %p107 = por %p105, %p106
      %p109 = scmp.ne.s32.totalorder %s94, %s108
      %p110 = scmp.eq.s32.totalorder %s21, 0
      %p111 = por %p109, %p110
      %s113 = sadd.s32 %s112, 1
      %p116 = scmp.eq.s32.totalorder %s15, 2
      %p117 = scmp.ne.s32.totalorder %s112, %s114
      %p118 = scmp.eq.s32.totalorder %s15, 0
      %p119 = por %p117, %p118
      %p120 = scmp.ne.s32.totalorder %s112, %s114
      %p121 = scmp.eq.s32.totalorder %s20, 2
      %p122 = por %p120, %p121
      %p123 = scmp.ne.s32.totalorder %s114, %s115
      %p124 = scmp.eq.s32.totalorder %s20, 0
      %p125 = por %p123, %p124
      %p126 = scmp.ne.s32.totalorder %s114, %s115
      %p127 = scmp.eq.s32.totalorder %s21, 2
      %p128 = por %p126, %p127
      %p130 = scmp.ne.s32.totalorder %s115, %s129
      %p131 = scmp.eq.s32.totalorder %s21, 0
      %p132 = por %p130, %p131
      %s134 = sadd.s32 %s133, 1
      %p137 = scmp.eq.s32.totalorder %s15, 2
      %p138 = scmp.ne.s32.totalorder %s133, %s135
      %p139 = scmp.eq.s32.totalorder %s15, 0
      %p140 = por %p138, %p139
      %p141 = scmp.ne.s32.totalorder %s133, %s135
      %p142 = scmp.eq.s32.totalorder %s20, 2
      %p143 = por %p141, %p142
      %p144 = scmp.ne.s32.totalorder %s135, %s136
      %p145 = scmp.eq.s32.totalorder %s20, 0
      %p146 = por %p144, %p145
      %p147 = scmp.ne.s32.totalorder %s135, %s136
      %p148 = scmp.eq.s32.totalorder %s21, 2
      %p149 = por %p147, %p148
      %p151 = scmp.ne.s32.totalorder %s136, %s150
      %p152 = scmp.eq.s32.totalorder %s21, 0
      %p153 = por %p151, %p152
      %s155 = sadd.s32 %s154, 1
      %p158 = scmp.eq.s32.totalorder %s15, 2
      %p159 = scmp.ne.s32.totalorder %s154, %s156
      %p160 = scmp.eq.s32.totalorder %s15, 0
      %p161 = por %p159, %p160
      %p162 = scmp.ne.s32.totalorder %s154, %s156
      %p163 = scmp.eq.s32.totalorder %s20, 2
      %p164 = por %p162, %p163
      %p165 = scmp.ne.s32.totalorder %s156, %s157
      %p166 = scmp.eq.s32.totalorder %s20, 0
      %p167 = por %p165, %p166
      %p168 = scmp.ne.s32.totalorder %s156, %s157
      %p169 = scmp.eq.s32.totalorder %s21, 2
      %p170 = por %p168, %p169
      %p172 = scmp.ne.s32.totalorder %s157, %s171
      %p173 = scmp.eq.s32.totalorder %s21, 0
      %p174 = por %p172, %p173
      %s175 = ssub.s32 %s15, %s22
      %p176 = scmp.eq.s32.totalorder %s175, 0
      %s178 = sadd.s32 %s177, 1
      %s179 = scalar_select %p176, %s177, %s178
      %p182 = pneg %p176
      %p183 = scmp.eq.s32.totalorder %s15, 2
      %p184 = por %p182, %p183
      %p185 = scmp.ne.s32.totalorder %s177, %s180
      %p186 = scmp.eq.s32.totalorder %s15, 0
      %p187 = por %p185, %p186
      %p188 = scmp.ne.s32.totalorder %s177, %s180
      %p189 = scmp.eq.s32.totalorder %s20, 2
      %p190 = por %p188, %p189
      %p191 = scmp.ne.s32.totalorder %s180, %s181
      %p192 = scmp.eq.s32.totalorder %s20, 0
      %p193 = por %p191, %p192
      %p194 = scmp.ne.s32.totalorder %s180, %s181
      %p195 = scmp.eq.s32.totalorder %s21, 2
      %p196 = por %p194, %p195
      %p198 = scmp.ne.s32.totalorder %s181, %s197
      %p199 = scmp.eq.s32.totalorder %s21, 0
      %p200 = por %p198, %p199
      %p201 = scmp.le.s32.totalorder 1, %s15
      %p202 = scmp.lt.s32.totalorder %s15, 4
      %p203 = pnand %p201, %p202
      %p204 = pneg %p203
      // Predicated region
      $region9: #{a_call__.1} parent=5 // pred_check
        _
      $region10: #{a_call__.1} parent=5 // pred_check_branch
        %206 = sbr.rel (%p203) target = $region12
      $region11: #{a_call__.1} parent=5 // pred_region
        %s207 = ssub.s32 %s15, 1
        // Predicated region
        $region13: #{a_call__.1} parent=11 // pred_check
          %p208 = pneg %p62
        $region14: #{a_call__.1} parent=11 // pred_check_branch
          %210 = sbr.rel (%p208) target = $region16
        $region15: #{a_call__.1} parent=11 // pred_region
          %s212 = ssub.s32 1024, 1024
          %213 = vsyncadd [#allocation4], %s212
          %s214 = sshll.u32 [#allocation3], 4
          %s215 = int_to_ptr.vmem [resolvable:$true] %s214
          %220 = dma.hbm_to_vmem [thread:$0]  %s1, 1024, %s215, [#allocation4], 64, 64, 4
        $region16: #{a_call__.1} parent=11 // pred_fallthru
          _
        // Predicated region
        $region17: #{a_call__.1} parent=11 // pred_check
          %p221 = pneg %p83
        $region18: #{a_call__.1} parent=11 // pred_check_branch
          %223 = sbr.rel (%p221) target = $region20
        $region19: #{a_call__.1} parent=11 // pred_region
          %s225 = ssub.s32 2048, 2048
          %226 = vsyncadd [#allocation6], %s225
          %s227 = sshll.u32 [#allocation5], 4
          %s228 = int_to_ptr.vmem [resolvable:$true] %s227
          %233 = dma.hbm_to_vmem [thread:$0]  %s2, 2048, %s228, [#allocation6], 128, 128, 8
        $region20: #{a_call__.1} parent=11 // pred_fallthru
          _
        // Predicated region
        $region21: #{a_call__.1} parent=11 // pred_check
          %p234 = pneg %p104
        $region22: #{a_call__.1} parent=11 // pred_check_branch
          %236 = sbr.rel (%p234) target = $region24
        $region23: #{a_call__.1} parent=11 // pred_region
          _
        $region24: #{a_call__.1} parent=11 // pred_fallthru
          _
        // Predicated region
        $region25: #{a_call__.1} parent=11 // pred_check
          %p237 = pneg %p125
        $region26: #{a_call__.1} parent=11 // pred_check_branch
          %239 = sbr.rel (%p237) target = $region28
        $region27: #{a_call__.1} parent=11 // pred_region
          _
        $region28: #{a_call__.1} parent=11 // pred_fallthru
          _
        // Predicated region
        $region29: #{a_call__.1} parent=11 // pred_check
          %p240 = pneg %p146
        $region30: #{a_call__.1} parent=11 // pred_check_branch
          %242 = sbr.rel (%p240) target = $region32
        $region31: #{a_call__.1} parent=11 // pred_region
          _
        $region32: #{a_call__.1} parent=11 // pred_fallthru
          _
        // Predicated region
        $region33: #{a_call__.1} parent=11 // pred_check
          %p243 = pneg %p167
        $region34: #{a_call__.1} parent=11 // pred_check_branch
          %245 = sbr.rel (%p243) target = $region36
        $region35: #{a_call__.1} parent=11 // pred_region
          _
        $region36: #{a_call__.1} parent=11 // pred_fallthru
          _
      $region12: #{a_call__.1} parent=5 // pred_fallthru
        _
      %p246 = scmp.lt.s32.totalorder %s15, 3
      // Predicated region
      $region37: #{a_call__.1} parent=5 // pred_check
        %p247 = pneg %p246
      $region38: #{a_call__.1} parent=5 // pred_check_branch
        %249 = sbr.rel (%p247) target = $region40
      $region39: #{a_call__.1} parent=5 // pred_region
        // Predicated region
        $region41: #{a_call__.1} parent=39 // pred_check
          %p250 = pneg %p35
        $region42: #{a_call__.1} parent=39 // pred_check_branch
          %252 = sbr.rel (%p250) target = $region44
        $region43: #{a_call__.1} parent=39 // pred_region
          %s253 = sand.u32 %s25, 1
          %s254 = sand.u32 %s25, 1
          %s255 = smul.addr %s254, 16
          %s256 = scalar_lea.vmem [#allocation2], %s255
          %s257 = smul.addr %s15, 4
          %s258 = scalar_lea.vmem %s0, %s257
          // Predicated region
          $region45: #{a_call__.1} parent=43 // pred_check
            _
          $region46: #{a_call__.1} parent=43 // pred_check_branch
            %260 = sbr.rel (0) target = $region48
          $region47: #{a_call__.1} parent=43 // pred_region
            // Predicated region
            $region49: #{a_call__.1} parent=47 // pred_check
              _
            $region50: #{a_call__.1} parent=47 // pred_check_branch
              %262 = sbr.rel target = $region52
            $region51: #{a_call__.1} parent=47 // pred_region
              // Predicated region
              $region64: #{a_call__.1} parent=51 // pred_check
                _
              $region65: #{a_call__.1} parent=51 // pred_check_branch
                %284 = sbr.rel (0) target = $region67
              $region66: #{a_call__.1} parent=51 // pred_region
                loop: start=0, step=1, limit=1
                $region68: #{a_call__.1} parent=66 // loop_pre_header
                  _
                $region69: #{a_call__.1} parent=66 // loop_header
                  %s286 = sphi 0, %s290
                  %p287 = scmp.ge.s32.totalorder %s286, 1
                  %s291 = sphi %s258, %s258
                  %s292 = sphi %s256, %s256
                $region70: #{a_call__.1} parent=66 // loop_header_branch
                  %289 = sbr.rel (%p287) target = $region74
                $region71: #{a_call__.1} parent=66 // loop_body
                  _
                $region72: #{a_call__.1} parent=66 // loop_footer
                  %s290 = sadd.s32 1, %s286
                $region73: #{a_call__.1} parent=66 // loop_footer_branch
                  %285 = sbr.rel target = $region69
                $region74: #{a_call__.1} parent=66 // loop_exit
                  _
                %s294 = ssub.s32 16, 1
                loop: start=0, step=1, limit=1
                $region75: #{a_call__.1} parent=66 // loop_pre_header
                  _
                $region76: #{a_call__.1} parent=66 // loop_header
                  %s296 = sphi 0, %s300
                  %p297 = scmp.ge.s32.totalorder %s296, 1
                  %s301 = sphi %s258, %s258
                  %s302 = sphi %s256, %s256
                $region77: #{a_call__.1} parent=66 // loop_header_branch
                  %299 = sbr.rel (%p297) target = $region81
                $region78: #{a_call__.1} parent=66 // loop_body
                  %v303 = vld [vmem:[%s301] sm:%s294]
                  %304 = vst [vmem:[%s302] sm:%s294] %v303
                  %v305 = vld [vmem:[%s301 + $0xc] sm:%s294]
                  %306 = vst [vmem:[%s302 + $0x4] sm:%s294] %v305
                  %v307 = vld [vmem:[%s301 + $0x18] sm:%s294]
                  %308 = vst [vmem:[%s302 + $0x8] sm:%s294] %v307
                  %v309 = vld [vmem:[%s301 + $0x24] sm:%s294]
                  %310 = vst [vmem:[%s302 + $0xc] sm:%s294] %v309
                $region79: #{a_call__.1} parent=66 // loop_footer
                  %s300 = sadd.s32 1, %s296
                $region80: #{a_call__.1} parent=66 // loop_footer_branch
                  %295 = sbr.rel target = $region76
                $region81: #{a_call__.1} parent=66 // loop_exit
                  _
              $region67: #{a_call__.1} parent=51 // pred_fallthru
                _
            $region52: #{a_call__.1} parent=47 // pred_fallthru
              _
            // Predicated region
            $region53: #{a_call__.1} parent=47 // pred_check
              _
            $region54: #{a_call__.1} parent=47 // pred_check_branch
              %264 = sbr.rel (0) target = $region56
            $region55: #{a_call__.1} parent=47 // pred_region
              %s266 = ssub.s32 16, 1
              loop: start=0, step=1, limit=1
              $region57: #{a_call__.1} parent=55 // loop_pre_header
                _
              $region58: #{a_call__.1} parent=55 // loop_header
                %s268 = sphi 0, %s272
                %p269 = scmp.ge.s32.totalorder %s268, 1
                %s273 = sphi %s258, %s258
                %s274 = sphi %s256, %s256
              $region59: #{a_call__.1} parent=55 // loop_header_branch
                %271 = sbr.rel (%p269) target = $region63
              $region60: #{a_call__.1} parent=55 // loop_body
                %v275 = vld [vmem:[%s273] sm:%s266]
                %276 = vst [vmem:[%s274] sm:%s266] %v275
                %v277 = vld [vmem:[%s273 + $0xc] sm:%s266]
                %278 = vst [vmem:[%s274 + $0x4] sm:%s266] %v277
                %v279 = vld [vmem:[%s273 + $0x18] sm:%s266]
                %280 = vst [vmem:[%s274 + $0x8] sm:%s266] %v279
                %v281 = vld [vmem:[%s273 + $0x24] sm:%s266]
                %282 = vst [vmem:[%s274 + $0xc] sm:%s266] %v281
              $region61: #{a_call__.1} parent=55 // loop_footer
                %s272 = sadd.s32 1, %s268
              $region62: #{a_call__.1} parent=55 // loop_footer_branch
                %267 = sbr.rel target = $region58
              $region63: #{a_call__.1} parent=55 // loop_exit
                _
            $region56: #{a_call__.1} parent=47 // pred_fallthru
              _
          $region48: #{a_call__.1} parent=43 // pred_fallthru
            _
          %311 = vnop
        $region44: #{a_call__.1} parent=39 // pred_fallthru
          _
      $region40: #{a_call__.1} parent=5 // pred_fallthru
        _
      %p312 = scmp.le.s32.totalorder 1, %s15
      %p313 = scmp.lt.s32.totalorder %s15, 4
      %p314 = pnand %p312, %p313
      %p315 = pneg %p314
      // Predicated region
      $region82: #{a_call__.1} parent=5 // pred_check
        _
      $region83: #{a_call__.1} parent=5 // pred_check_branch
        %317 = sbr.rel (%p314) target = $region85
      $region84: #{a_call__.1} parent=5 // pred_region
        %s318 = ssub.s32 %s15, 1
        %s319 = sand.u32 %s28, 1
        %s320 = sand.u32 %s28, 1
        %s321 = smul.addr %s320, 16
        %s322 = scalar_lea.vmem [#allocation2], %s321
        // Predicated region
        $region86: #{a_call__.1} parent=84 // pred_check
          %p323 = pneg %p41
        $region87: #{a_call__.1} parent=84 // pred_check_branch
          %325 = sbr.rel (%p323) target = $region89
        $region88: #{a_call__.1} parent=84 // pred_region
          _
        $region89: #{a_call__.1} parent=84 // pred_fallthru
          _
        // Predicated region
        $region90: #{a_call__.1} parent=84 // pred_check
          %p326 = pneg %p62
        $region91: #{a_call__.1} parent=84 // pred_check_branch
          %328 = sbr.rel (%p326) target = $region93
        $region92: #{a_call__.1} parent=84 // pred_region
          %329 = dma.done [#allocation4], 1024
        $region93: #{a_call__.1} parent=84 // pred_fallthru
          _
        // Predicated region
        $region94: #{a_call__.1} parent=84 // pred_check
          %p330 = pneg %p83
        $region95: #{a_call__.1} parent=84 // pred_check_branch
          %332 = sbr.rel (%p330) target = $region97
        $region96: #{a_call__.1} parent=84 // pred_region
          %333 = dma.done [#allocation6], 2048
        $region97: #{a_call__.1} parent=84 // pred_fallthru
          _
        %s334 = sand.u32 %s28, 1
        %s335 = sand.u32 %s28, 1
        %s336 = smul.addr %s335, 16
        %s337 = scalar_lea.vmem [#allocation2], %s336
        %p338 = pneg %p41
        %p339 = pneg %p38
        %p340 = pneg %p62
        %p341 = pneg %p59
        %p342 = pneg %p83
        %p343 = pneg %p80
        %p344 = pneg %p104
        %p345 = pneg %p101
        %p346 = pneg %p125
        %p347 = pneg %p122
        %p348 = pneg %p146
        %p349 = pneg %p143
        %p350 = pneg %p167
        %p351 = pneg %p164
        %p352 = pneg %p193
        %p353 = pneg %p190
        %p354 = scmp.lt.s32.totalorder %s20, 2
        %s355 = scalar_select %p354, %s20, 2
        %s356 = smul.addr %s355, 8
        %s357 = scalar_lea.vmem %s7, %s356
        %p358 = scmp.lt.s32.totalorder %s20, 2
        %s359 = scalar_select %p358, %s20, 2
        %s360 = smul.addr %s359, 8
        %s361 = scalar_lea.vmem %s7, %s360
        %v363 = vld [vmem:[%s322] sm:$0xf]
        %v364 = vld [vmem:[%s322 + $0x4] sm:$0xf]
        %v365 = vld [vmem:[%s322 + $0x8] sm:$0xf]
        %v366 = vld [vmem:[%s322 + $0xc] sm:$0xf]
        %v367 = vld [vmem:[#allocation3] sm:$0xf]
        %v368 = vld [vmem:[#allocation3 + $0x4] sm:$0xf]
        %v369 = vld [vmem:[#allocation3 + $0x8] sm:$0xf]
        %v370 = vld [vmem:[#allocation3 + $0xc] sm:$0xf]
        %v371 = vld [vmem:[#allocation3 + $0x10] sm:$0xf]
        %v372 = vld [vmem:[#allocation3 + $0x14] sm:$0xf]
        %v373 = vld [vmem:[#allocation3 + $0x18] sm:$0xf]
        %v374 = vld [vmem:[#allocation3 + $0x1c] sm:$0xf]
        %v375 = vld [vmem:[#allocation3 + $0x20] sm:$0xf]
        %v376 = vld [vmem:[#allocation3 + $0x24] sm:$0xf]
        %v377 = vld [vmem:[#allocation3 + $0x28] sm:$0xf]
        %v378 = vld [vmem:[#allocation3 + $0x2c] sm:$0xf]
        %v379 = vld [vmem:[#allocation3 + $0x30] sm:$0xf]
        %v380 = vld [vmem:[#allocation3 + $0x34] sm:$0xf]
        %v381 = vld [vmem:[#allocation3 + $0x38] sm:$0xf]
        %v382 = vld [vmem:[#allocation3 + $0x3c] sm:$0xf]
        %v383 = vld [vmem:[#allocation5] sm:$0xff]
        %v384 = vld [vmem:[#allocation5 + $0x8] sm:$0xff]
        %v385 = vld [vmem:[#allocation5 + $0x10] sm:$0xff]
        %v386 = vld [vmem:[#allocation5 + $0x18] sm:$0xff]
        %v387 = vld [vmem:[#allocation5 + $0x20] sm:$0xff]
        %v388 = vld [vmem:[#allocation5 + $0x28] sm:$0xff]
        %v389 = vld [vmem:[#allocation5 + $0x30] sm:$0xff]
        %v390 = vld [vmem:[#allocation5 + $0x38] sm:$0xff]
        %v391 = vld [vmem:[#allocation5 + $0x40] sm:$0xff]
        %v392 = vld [vmem:[#allocation5 + $0x48] sm:$0xff]
        %v393 = vld [vmem:[#allocation5 + $0x50] sm:$0xff]
        %v394 = vld [vmem:[#allocation5 + $0x58] sm:$0xff]
        %v395 = vld [vmem:[#allocation5 + $0x60] sm:$0xff]
        %v396 = vld [vmem:[#allocation5 + $0x68] sm:$0xff]
        %v397 = vld [vmem:[#allocation5 + $0x70] sm:$0xff]
        %v398 = vld [vmem:[#allocation5 + $0x78] sm:$0xff]
        %400 = vset.pattern.permute.xlu0 0
        %401 = vperm.xlu0 %400, %v383
        %v402 = vpop.permute.xlu0 %401
        %405 = vset.pattern.permute.xlu0 0
        %406 = vperm.xlu0 %405, %v384
        %v407 = vpop.permute.xlu0 %406
        %410 = vset.pattern.permute.xlu0 0
        %411 = vperm.xlu0 %410, %v385
        %v412 = vpop.permute.xlu0 %411
        %415 = vset.pattern.permute.xlu0 0
        %416 = vperm.xlu0 %415, %v386
        %v417 = vpop.permute.xlu0 %416
        %420 = vset.pattern.permute.xlu0 0
        %421 = vperm.xlu0 %420, %v387
        %v422 = vpop.permute.xlu0 %421
        %425 = vset.pattern.permute.xlu0 0
        %426 = vperm.xlu0 %425, %v388
        %v427 = vpop.permute.xlu0 %426
        %430 = vset.pattern.permute.xlu0 0
        %431 = vperm.xlu0 %430, %v389
        %v432 = vpop.permute.xlu0 %431
        %435 = vset.pattern.permute.xlu0 0
        %436 = vperm.xlu0 %435, %v390
        %v437 = vpop.permute.xlu0 %436
        %440 = vset.pattern.permute.xlu0 0
        %441 = vperm.xlu0 %440, %v391
        %v442 = vpop.permute.xlu0 %441
        %445 = vset.pattern.permute.xlu0 0
        %446 = vperm.xlu0 %445, %v392
        %v447 = vpop.permute.xlu0 %446
        %450 = vset.pattern.permute.xlu0 0
        %451 = vperm.xlu0 %450, %v393
        %v452 = vpop.permute.xlu0 %451
        %455 = vset.pattern.permute.xlu0 0
        %456 = vperm.xlu0 %455, %v394
        %v457 = vpop.permute.xlu0 %456
        %460 = vset.pattern.permute.xlu0 0
        %461 = vperm.xlu0 %460, %v395
        %v462 = vpop.permute.xlu0 %461
        %465 = vset.pattern.permute.xlu0 0
        %466 = vperm.xlu0 %465, %v396
        %v467 = vpop.permute.xlu0 %466
        %470 = vset.pattern.permute.xlu0 0
        %471 = vperm.xlu0 %470, %v397
        %v472 = vpop.permute.xlu0 %471
        %475 = vset.pattern.permute.xlu0 0
        %476 = vperm.xlu0 %475, %v398
        %v477 = vpop.permute.xlu0 %476
        %v495 = vunpack.c.l.b16 %v367
        %v496 = vunpack.c.l.b16 %v368
        %v497 = vunpack.c.l.b16 %v369
        %v498 = vunpack.c.l.b16 %v370
        %v499 = vunpack.c.l.b16 %v371
        %v500 = vunpack.c.l.b16 %v372
        %v501 = vunpack.c.l.b16 %v373
        %v502 = vunpack.c.l.b16 %v374
        %v503 = vunpack.c.l.b16 %v375
        %v504 = vunpack.c.l.b16 %v376
        %v505 = vunpack.c.l.b16 %v377
        %v506 = vunpack.c.l.b16 %v378
        %v507 = vunpack.c.l.b16 %v379
        %v508 = vunpack.c.l.b16 %v380
        %v509 = vunpack.c.l.b16 %v381
        %v510 = vunpack.c.l.b16 %v382
        %v511 = vpack.c.b16 %v496, %v495
        %v512 = vpack.c.b16 %v498, %v497
        %v513 = vpack.c.b16 %v500, %v499
        %v514 = vpack.c.b16 %v502, %v501
        %v515 = vpack.c.b16 %v504, %v503
        %v516 = vpack.c.b16 %v506, %v505
        %v517 = vpack.c.b16 %v508, %v507
        %v518 = vpack.c.b16 %v510, %v509
        %v523 = vunpack.c.l.b16 %v363
        %v524 = vunpack.c.l.b16 %v364
        %v525 = vunpack.c.l.b16 %v365
        %v526 = vunpack.c.l.b16 %v366
        %v527 = vpack.c.b16 %v524, %v523
        %v528 = vpack.c.b16 %v526, %v525
        %vm531 = vcmask 261120
        %v533 = vsel %vm531, %v511, 0
        %v536 = vsel %vm531, %v512, 0
        %v539 = vsel %vm531, %v513, 0
        %v542 = vsel %vm531, %v514, 0
        %v545 = vsel %vm531, %v515, 0
        %v548 = vsel %vm531, %v516, 0
        %v551 = vsel %vm531, %v517, 0
        %v554 = vsel %vm531, %v518, 0
        %556 = vmatprep.subr.bf16.mxu0 0
        %557 = vmatpush1.bf16.msra.mxu0 0
        %558 = vmatprep.subr.bf16.mxu0 0
        %559 = vmatpush1.bf16.msra.mxu0 0
        %560 = vmatprep.subr.bf16.mxu0 0
        %561 = vmatpush1.bf16.msra.mxu0 0
        %562 = vmatprep.subr.bf16.mxu0 0
        %563 = vmatpush1.bf16.msra.mxu0 0
        %564 = vmatprep.subr.bf16.mxu0 0
        %565 = vmatpush1.bf16.msra.mxu0 0
        %566 = vmatprep.subr.bf16.mxu0 0
        %567 = vmatpush1.bf16.msra.mxu0 0
        %568 = vmatprep.subr.bf16.mxu0 0
        %569 = vmatpush1.bf16.msra.mxu0 %v528
        %570 = vmatprep.subr.bf16.mxu0 0
        %571 = vmatpush1.bf16.msra.mxu0 %v527
        %572 = vmatprep.subr.bf16.mxu0 0
        %573 = vmatpush2.bf16.msra.mxu0 0
        %574 = vmatprep.subr.bf16.mxu0 0
        %575 = vmatpush2.bf16.msra.mxu0 0
        %576 = vmatprep.subr.bf16.mxu0 0
        %577 = vmatpush2.bf16.msra.mxu0 0
        %578 = vmatprep.subr.bf16.mxu0 0
        %579 = vmatpush2.bf16.msra.mxu0 0
        %580 = vmatprep.subr.bf16.mxu0 0
        %581 = vmatpush2.bf16.msra.mxu0 0
        %582 = vmatprep.subr.bf16.mxu0 0
        %583 = vmatpush2.bf16.msra.mxu0 0
        %584 = vmatprep.subr.bf16.mxu0 0
        %585 = vmatpush2.bf16.msra.mxu0 0
        %586 = vmatprep.subr.bf16.mxu0 0
        %587 = vmatpush2.bf16.msra.mxu0 0
        %588 = vmatprep.mubr.bf16.mxu0 0
        %589 = vmatmul.mubr.bf16.gmra.mxu0 %v533
        %v590 = vpop.f32.mrf.mxu0
        %v591 = vadd.f32 %v402, %v590
        %v592 = vpop.f32.mrf.mxu0
        %v593 = vpop.f32.mrf.mxu0
        %v594 = vadd.f32 %v407, %v593
        %v595 = vpop.f32.mrf.mxu0
        %596 = vmatprep.mubr.bf16.mxu0 0
        %597 = vmatmul.mubr.bf16.gmra.mxu0 %v536
        %v598 = vpop.f32.mrf.mxu0
        %v599 = vadd.f32 %v412, %v598
        %v600 = vpop.f32.mrf.mxu0
        %v601 = vpop.f32.mrf.mxu0
        %v602 = vadd.f32 %v417, %v601
        %v603 = vpop.f32.mrf.mxu0
        %604 = vmatprep.mubr.bf16.mxu0 0
        %605 = vmatmul.mubr.bf16.gmra.mxu0 %v539
        %v606 = vpop.f32.mrf.mxu0
        %v607 = vadd.f32 %v422, %v606
        %v608 = vpop.f32.mrf.mxu0
        %v609 = vpop.f32.mrf.mxu0
        %v610 = vadd.f32 %v427, %v609
        %v611 = vpop.f32.mrf.mxu0
        %612 = vmatprep.mubr.bf16.mxu0 0
        %613 = vmatmul.mubr.bf16.gmra.mxu0 %v542
        %v614 = vpop.f32.mrf.mxu0
        %v615 = vadd.f32 %v432, %v614
        %v616 = vpop.f32.mrf.mxu0
        %v617 = vpop.f32.mrf.mxu0
        %v618 = vadd.f32 %v437, %v617
        %v619 = vpop.f32.mrf.mxu0
        %620 = vmatprep.mubr.bf16.mxu0 0
        %621 = vmatmul.mubr.bf16.gmra.mxu0 %v545
        %v622 = vpop.f32.mrf.mxu0
        %v623 = vadd.f32 %v442, %v622
        %v624 = vpop.f32.mrf.mxu0
        %v625 = vpop.f32.mrf.mxu0
        %v626 = vadd.f32 %v447, %v625
        %v627 = vpop.f32.mrf.mxu0
        %628 = vmatprep.mubr.bf16.mxu0 0
        %629 = vmatmul.mubr.bf16.gmra.mxu0 %v548
        %v630 = vpop.f32.mrf.mxu0
        %v631 = vadd.f32 %v452, %v630
        %v632 = vpop.f32.mrf.mxu0
        %v633 = vpop.f32.mrf.mxu0
        %v634 = vadd.f32 %v457, %v633
        %v635 = vpop.f32.mrf.mxu0
        %636 = vmatprep.mubr.bf16.mxu0 0
        %637 = vmatmul.mubr.bf16.gmra.mxu0 %v551
        %v638 = vpop.f32.mrf.mxu0
        %v639 = vadd.f32 %v462, %v638
        %v640 = vpop.f32.mrf.mxu0
        %v641 = vpop.f32.mrf.mxu0
        %v642 = vadd.f32 %v467, %v641
        %v643 = vpop.f32.mrf.mxu0
        %644 = vmatprep.mubr.bf16.mxu0 0
        %645 = vmatmul.mubr.bf16.gmra.mxu0 %v554
        %v646 = vpop.f32.mrf.mxu0
        %v647 = vadd.f32 %v472, %v646
        %v648 = vpop.f32.mrf.mxu0
        %v649 = vpop.f32.mrf.mxu0
        %v650 = vadd.f32 %v477, %v649
        %v651 = vpop.f32.mrf.mxu0
        %652 = vdwg.mxu0
        %v653 = vsub.f32 0.0, %v591
        %v654 = vsub.f32 0.0, %v594
        %v655 = vsub.f32 0.0, %v599
        %v656 = vsub.f32 0.0, %v602
        %v657 = vsub.f32 0.0, %v607
        %v658 = vsub.f32 0.0, %v610
        %v659 = vsub.f32 0.0, %v615
        %v660 = vsub.f32 0.0, %v618
        %v661 = vsub.f32 0.0, %v623
        %v662 = vsub.f32 0.0, %v626
        %v663 = vsub.f32 0.0, %v631
        %v664 = vsub.f32 0.0, %v634
        %v665 = vsub.f32 0.0, %v639
        %v666 = vsub.f32 0.0, %v642
        %v667 = vsub.f32 0.0, %v647
        %v668 = vsub.f32 0.0, %v650
        %v669 = vmul.f32 %v653, 1.442695
        %v670 = vpow.pop %v669
        %v671 = vmul.f32 %v654, 1.442695
        %v672 = vpow.pop %v671
        %v673 = vmul.f32 %v655, 1.442695
        %v674 = vpow.pop %v673
        %v675 = vmul.f32 %v656, 1.442695
        %v676 = vpow.pop %v675
        %v677 = vmul.f32 %v657, 1.442695
        %v678 = vpow.pop %v677
        %v679 = vmul.f32 %v658, 1.442695
        %v680 = vpow.pop %v679
        %v681 = vmul.f32 %v659, 1.442695
        %v682 = vpow.pop %v681
        %v683 = vmul.f32 %v660, 1.442695
        %v684 = vpow.pop %v683
        %v685 = vmul.f32 %v661, 1.442695
        %v686 = vpow.pop %v685
        %v687 = vmul.f32 %v662, 1.442695
        %v688 = vpow.pop %v687
        %v689 = vmul.f32 %v663, 1.442695
        %v690 = vpow.pop %v689
        %v691 = vmul.f32 %v664, 1.442695
        %v692 = vpow.pop %v691
        %v693 = vmul.f32 %v665, 1.442695
        %v694 = vpow.pop %v693
        %v695 = vmul.f32 %v666, 1.442695
        %v696 = vpow.pop %v695
        %v697 = vmul.f32 %v667, 1.442695
        %v698 = vpow.pop %v697
        %v699 = vmul.f32 %v668, 1.442695
        %v700 = vpow.pop %v699
        %v701 = vadd.f32 %v670, 1.0
        %v702 = vadd.f32 %v672, 1.0
        %v703 = vadd.f32 %v674, 1.0
        %v704 = vadd.f32 %v676, 1.0
        %v705 = vadd.f32 %v678, 1.0
        %v706 = vadd.f32 %v680, 1.0
        %v707 = vadd.f32 %v682, 1.0
        %v708 = vadd.f32 %v684, 1.0
        %v709 = vadd.f32 %v686, 1.0
        %v710 = vadd.f32 %v688, 1.0
        %v711 = vadd.f32 %v690, 1.0
        %v712 = vadd.f32 %v692, 1.0
        %v713 = vadd.f32 %v694, 1.0
        %v714 = vadd.f32 %v696, 1.0
        %v715 = vadd.f32 %v698, 1.0
        %v716 = vadd.f32 %v700, 1.0
        %v717 = vrcp.pop %v701
        %v718 = vrcp.pop %v702
        %v719 = vrcp.pop %v703
        %v720 = vrcp.pop %v704
        %v721 = vrcp.pop %v705
        %v722 = vrcp.pop %v706
        %v723 = vrcp.pop %v707
        %v724 = vrcp.pop %v708
        %v725 = vrcp.pop %v709
        %v726 = vrcp.pop %v710
        %v727 = vrcp.pop %v711
        %v728 = vrcp.pop %v712
        %v729 = vrcp.pop %v713
        %v730 = vrcp.pop %v714
        %v731 = vrcp.pop %v715
        %v732 = vrcp.pop %v716
        %v733 = vmul.f32 %v591, %v717
        %v734 = vmul.f32 %v594, %v718
        %v735 = vmul.f32 %v599, %v719
        %v736 = vmul.f32 %v602, %v720
        %v737 = vmul.f32 %v607, %v721
        %v738 = vmul.f32 %v610, %v722
        %v739 = vmul.f32 %v615, %v723
        %v740 = vmul.f32 %v618, %v724
        %v741 = vmul.f32 %v623, %v725
        %v742 = vmul.f32 %v626, %v726
        %v743 = vmul.f32 %v631, %v727
        %v744 = vmul.f32 %v634, %v728
        %v745 = vmul.f32 %v639, %v729
        %v746 = vmul.f32 %v642, %v730
        %v747 = vmul.f32 %v647, %v731
        %v748 = vmul.f32 %v650, %v732
        %v749 = vpack.c.bf16 %v734, %v733
        %v750 = vpack.c.bf16 %v736, %v735
        %v751 = vpack.c.bf16 %v738, %v737
        %v752 = vpack.c.bf16 %v740, %v739
        %v753 = vpack.c.bf16 %v742, %v741
        %v754 = vpack.c.bf16 %v744, %v743
        %v755 = vpack.c.bf16 %v746, %v745
        %v756 = vpack.c.bf16 %v748, %v747
        %v757 = vld [vmem:[%s3] sm:$0xf]
        %v758 = vld [vmem:[%s3 + $0x4] sm:$0xf]
        %v759 = vld [vmem:[%s3 + $0x8] sm:$0xf]
        %v760 = vld [vmem:[%s3 + $0xc] sm:$0xf]
        %v761 = vld [vmem:[%s3 + $0x10] sm:$0xf]
        %v762 = vld [vmem:[%s3 + $0x14] sm:$0xf]
        %v763 = vld [vmem:[%s3 + $0x18] sm:$0xf]
        %v764 = vld [vmem:[%s3 + $0x1c] sm:$0xf]
        %v765 = vld [vmem:[%s3 + $0x20] sm:$0xf]
        %v766 = vld [vmem:[%s3 + $0x24] sm:$0xf]
        %v767 = vld [vmem:[%s3 + $0x28] sm:$0xf]
        %v768 = vld [vmem:[%s3 + $0x2c] sm:$0xf]
        %v769 = vld [vmem:[%s3 + $0x30] sm:$0xf]
        %v770 = vld [vmem:[%s3 + $0x34] sm:$0xf]
        %v771 = vld [vmem:[%s3 + $0x38] sm:$0xf]
        %v772 = vld [vmem:[%s3 + $0x3c] sm:$0xf]
        %v773 = vld [vmem:[%s4] sm:$0xff]
        %v774 = vld [vmem:[%s4 + $0x8] sm:$0xff]
        %v775 = vld [vmem:[%s4 + $0x10] sm:$0xff]
        %v776 = vld [vmem:[%s4 + $0x18] sm:$0xff]
        %v777 = vld [vmem:[%s4 + $0x20] sm:$0xff]
        %v778 = vld [vmem:[%s4 + $0x28] sm:$0xff]
        %v779 = vld [vmem:[%s4 + $0x30] sm:$0xff]
        %v780 = vld [vmem:[%s4 + $0x38] sm:$0xff]
        %v781 = vld [vmem:[%s4 + $0x40] sm:$0xff]
        %v782 = vld [vmem:[%s4 + $0x48] sm:$0xff]
        %v783 = vld [vmem:[%s4 + $0x50] sm:$0xff]
        %v784 = vld [vmem:[%s4 + $0x58] sm:$0xff]
        %v785 = vld [vmem:[%s4 + $0x60] sm:$0xff]
        %v786 = vld [vmem:[%s4 + $0x68] sm:$0xff]
        %v787 = vld [vmem:[%s4 + $0x70] sm:$0xff]
        %v788 = vld [vmem:[%s4 + $0x78] sm:$0xff]
        %790 = vset.pattern.permute.xlu0 0
        %791 = vperm.xlu0 %790, %v773
        %v792 = vpop.permute.xlu0 %791
        %795 = vset.pattern.permute.xlu0 0
        %796 = vperm.xlu0 %795, %v774
        %v797 = vpop.permute.xlu0 %796
        %800 = vset.pattern.permute.xlu0 0
        %801 = vperm.xlu0 %800, %v775
        %v802 = vpop.permute.xlu0 %801
        %805 = vset.pattern.permute.xlu0 0
        %806 = vperm.xlu0 %805, %v776
        %v807 = vpop.permute.xlu0 %806
        %810 = vset.pattern.permute.xlu0 0
        %811 = vperm.xlu0 %810, %v777
        %v812 = vpop.permute.xlu0 %811
        %815 = vset.pattern.permute.xlu0 0
        %816 = vperm.xlu0 %815, %v778
        %v817 = vpop.permute.xlu0 %816
        %820 = vset.pattern.permute.xlu0 0
        %821 = vperm.xlu0 %820, %v779
        %v822 = vpop.permute.xlu0 %821
        %825 = vset.pattern.permute.xlu0 0
        %826 = vperm.xlu0 %825, %v780
        %v827 = vpop.permute.xlu0 %826
        %830 = vset.pattern.permute.xlu0 0
        %831 = vperm.xlu0 %830, %v781
        %v832 = vpop.permute.xlu0 %831
        %835 = vset.pattern.permute.xlu0 0
        %836 = vperm.xlu0 %835, %v782
        %v837 = vpop.permute.xlu0 %836
        %840 = vset.pattern.permute.xlu0 0
        %841 = vperm.xlu0 %840, %v783
        %v842 = vpop.permute.xlu0 %841
        %845 = vset.pattern.permute.xlu0 0
        %846 = vperm.xlu0 %845, %v784
        %v847 = vpop.permute.xlu0 %846
        %850 = vset.pattern.permute.xlu0 0
        %851 = vperm.xlu0 %850, %v785
        %v852 = vpop.permute.xlu0 %851
        %855 = vset.pattern.permute.xlu0 0
        %856 = vperm.xlu0 %855, %v786
        %v857 = vpop.permute.xlu0 %856
        %860 = vset.pattern.permute.xlu0 0
        %861 = vperm.xlu0 %860, %v787
        %v862 = vpop.permute.xlu0 %861
        %865 = vset.pattern.permute.xlu0 0
        %866 = vperm.xlu0 %865, %v788
        %v867 = vpop.permute.xlu0 %866
        %v885 = vunpack.c.l.b16 %v757
        %v886 = vunpack.c.l.b16 %v758
        %v887 = vunpack.c.l.b16 %v759
        %v888 = vunpack.c.l.b16 %v760
        %v889 = vunpack.c.l.b16 %v761
        %v890 = vunpack.c.l.b16 %v762
        %v891 = vunpack.c.l.b16 %v763
        %v892 = vunpack.c.l.b16 %v764
        %v893 = vunpack.c.l.b16 %v765
        %v894 = vunpack.c.l.b16 %v766
        %v895 = vunpack.c.l.b16 %v767
        %v896 = vunpack.c.l.b16 %v768
        %v897 = vunpack.c.l.b16 %v769
        %v898 = vunpack.c.l.b16 %v770
        %v899 = vunpack.c.l.b16 %v771
        %v900 = vunpack.c.l.b16 %v772
        %v901 = vpack.c.b16 %v886, %v885
        %v902 = vpack.c.b16 %v888, %v887
        %v903 = vpack.c.b16 %v890, %v889
        %v904 = vpack.c.b16 %v892, %v891
        %v905 = vpack.c.b16 %v894, %v893
        %v906 = vpack.c.b16 %v896, %v895
        %v907 = vpack.c.b16 %v898, %v897
        %v908 = vpack.c.b16 %v900, %v899
        %917 = vmatprep.subr.bf16.mxu0 0
        %918 = vmatpush1.bf16.msra.mxu0 %v756
        %919 = vmatprep.subr.bf16.mxu0 0
        %920 = vmatpush1.bf16.msra.mxu0 %v755
        %921 = vmatprep.subr.bf16.mxu0 0
        %922 = vmatpush1.bf16.msra.mxu0 %v754
        %923 = vmatprep.subr.bf16.mxu0 0
        %924 = vmatpush1.bf16.msra.mxu0 %v753
        %925 = vmatprep.subr.bf16.mxu0 0
        %926 = vmatpush1.bf16.msra.mxu0 %v752
        %927 = vmatprep.subr.bf16.mxu0 0
        %928 = vmatpush1.bf16.msra.mxu0 %v751
        %929 = vmatprep.subr.bf16.mxu0 0
        %930 = vmatpush1.bf16.msra.mxu0 %v750
        %931 = vmatprep.subr.bf16.mxu0 0
        %932 = vmatpush1.bf16.msra.mxu0 %v749
        %933 = vmatprep.subr.bf16.mxu0 0
        %934 = vmatpush2.bf16.msra.mxu0 0
        %935 = vmatprep.subr.bf16.mxu0 0
        %936 = vmatpush2.bf16.msra.mxu0 0
        %937 = vmatprep.subr.bf16.mxu0 0
        %938 = vmatpush2.bf16.msra.mxu0 0
        %939 = vmatprep.subr.bf16.mxu0 0
        %940 = vmatpush2.bf16.msra.mxu0 0
        %941 = vmatprep.subr.bf16.mxu0 0
        %942 = vmatpush2.bf16.msra.mxu0 0
        %943 = vmatprep.subr.bf16.mxu0 0
        %944 = vmatpush2.bf16.msra.mxu0 0
        %945 = vmatprep.subr.bf16.mxu0 0
        %946 = vmatpush2.bf16.msra.mxu0 0
        %947 = vmatprep.subr.bf16.mxu0 0
        %948 = vmatpush2.bf16.msra.mxu0 0
        %949 = vmatprep.mubr.bf16.mxu0 0
        %950 = vmatmul.mubr.bf16.gmra.mxu0 %v901
        %v951 = vpop.f32.mrf.mxu0
        %v952 = vadd.f32 %v792, %v951
        %v953 = vpop.f32.mrf.mxu0
        %v954 = vpop.f32.mrf.mxu0
        %v955 = vadd.f32 %v797, %v954
        %v956 = vpop.f32.mrf.mxu0
        %957 = vmatprep.mubr.bf16.mxu0 0
        %958 = vmatmul.mubr.bf16.gmra.mxu0 %v902
        %v959 = vpop.f32.mrf.mxu0
        %v960 = vadd.f32 %v802, %v959
        %v961 = vpop.f32.mrf.mxu0
        %v962 = vpop.f32.mrf.mxu0
        %v963 = vadd.f32 %v807, %v962
        %v964 = vpop.f32.mrf.mxu0
        %965 = vmatprep.mubr.bf16.mxu0 0
        %966 = vmatmul.mubr.bf16.gmra.mxu0 %v903
        %v967 = vpop.f32.mrf.mxu0
        %v968 = vadd.f32 %v812, %v967
        %v969 = vpop.f32.mrf.mxu0
        %v970 = vpop.f32.mrf.mxu0
        %v971 = vadd.f32 %v817, %v970
        %v972 = vpop.f32.mrf.mxu0
        %973 = vmatprep.mubr.bf16.mxu0 0
        %974 = vmatmul.mubr.bf16.gmra.mxu0 %v904
        %v975 = vpop.f32.mrf.mxu0
        %v976 = vadd.f32 %v822, %v975
        %v977 = vpop.f32.mrf.mxu0
        %v978 = vpop.f32.mrf.mxu0
        %v979 = vadd.f32 %v827, %v978
        %v980 = vpop.f32.mrf.mxu0
        %981 = vmatprep.mubr.bf16.mxu0 0
        %982 = vmatmul.mubr.bf16.gmra.mxu0 %v905
        %v983 = vpop.f32.mrf.mxu0
        %v984 = vadd.f32 %v832, %v983
        %v985 = vpop.f32.mrf.mxu0
        %v986 = vpop.f32.mrf.mxu0
        %v987 = vadd.f32 %v837, %v986
        %v988 = vpop.f32.mrf.mxu0
        %989 = vmatprep.mubr.bf16.mxu0 0
        %990 = vmatmul.mubr.bf16.gmra.mxu0 %v906
        %v991 = vpop.f32.mrf.mxu0
        %v992 = vadd.f32 %v842, %v991
        %v993 = vpop.f32.mrf.mxu0
        %v994 = vpop.f32.mrf.mxu0
        %v995 = vadd.f32 %v847, %v994
        %v996 = vpop.f32.mrf.mxu0
        %997 = vmatprep.mubr.bf16.mxu0 0
        %998 = vmatmul.mubr.bf16.gmra.mxu0 %v907
        %v999 = vpop.f32.mrf.mxu0
        %v1000 = vadd.f32 %v852, %v999
        %v1001 = vpop.f32.mrf.mxu0
        %v1002 = vpop.f32.mrf.mxu0
        %v1003 = vadd.f32 %v857, %v1002
        %v1004 = vpop.f32.mrf.mxu0
        %1005 = vmatprep.mubr.bf16.mxu0 0
        %1006 = vmatmul.mubr.bf16.gmra.mxu0 %v908
        %v1007 = vpop.f32.mrf.mxu0
        %v1008 = vadd.f32 %v862, %v1007
        %v1009 = vpop.f32.mrf.mxu0
        %v1010 = vpop.f32.mrf.mxu0
        %v1011 = vadd.f32 %v867, %v1010
        %v1012 = vpop.f32.mrf.mxu0
        %1013 = vdwg.mxu0
        %v1014 = vsub.f32 0.0, %v952
        %v1015 = vsub.f32 0.0, %v955
        %v1016 = vsub.f32 0.0, %v960
        %v1017 = vsub.f32 0.0, %v963
        %v1018 = vsub.f32 0.0, %v968
        %v1019 = vsub.f32 0.0, %v971
        %v1020 = vsub.f32 0.0, %v976
        %v1021 = vsub.f32 0.0, %v979
        %v1022 = vsub.f32 0.0, %v984
        %v1023 = vsub.f32 0.0, %v987
        %v1024 = vsub.f32 0.0, %v992
        %v1025 = vsub.f32 0.0, %v995
        %v1026 = vsub.f32 0.0, %v1000
        %v1027 = vsub.f32 0.0, %v1003
        %v1028 = vsub.f32 0.0, %v1008
        %v1029 = vsub.f32 0.0, %v1011
        %v1030 = vmul.f32 %v1014, 1.442695
        %v1031 = vpow.pop %v1030
        %v1032 = vmul.f32 %v1015, 1.442695
        %v1033 = vpow.pop %v1032
        %v1034 = vmul.f32 %v1016, 1.442695
        %v1035 = vpow.pop %v1034
        %v1036 = vmul.f32 %v1017, 1.442695
        %v1037 = vpow.pop %v1036
        %v1038 = vmul.f32 %v1018, 1.442695
        %v1039 = vpow.pop %v1038
        %v1040 = vmul.f32 %v1019, 1.442695
        %v1041 = vpow.pop %v1040
        %v1042 = vmul.f32 %v1020, 1.442695
        %v1043 = vpow.pop %v1042
        %v1044 = vmul.f32 %v1021, 1.442695
        %v1045 = vpow.pop %v1044
        %v1046 = vmul.f32 %v1022, 1.442695
        %v1047 = vpow.pop %v1046
        %v1048 = vmul.f32 %v1023, 1.442695
        %v1049 = vpow.pop %v1048
        %v1050 = vmul.f32 %v1024, 1.442695
        %v1051 = vpow.pop %v1050
        %v1052 = vmul.f32 %v1025, 1.442695
        %v1053 = vpow.pop %v1052
        %v1054 = vmul.f32 %v1026, 1.442695
        %v1055 = vpow.pop %v1054
        %v1056 = vmul.f32 %v1027, 1.442695
        %v1057 = vpow.pop %v1056
        %v1058 = vmul.f32 %v1028, 1.442695
        %v1059 = vpow.pop %v1058
        %v1060 = vmul.f32 %v1029, 1.442695
        %v1061 = vpow.pop %v1060
        %v1062 = vadd.f32 %v1031, 1.0
        %v1063 = vadd.f32 %v1033, 1.0
        %v1064 = vadd.f32 %v1035, 1.0
        %v1065 = vadd.f32 %v1037, 1.0
        %v1066 = vadd.f32 %v1039, 1.0
        %v1067 = vadd.f32 %v1041, 1.0
        %v1068 = vadd.f32 %v1043, 1.0
        %v1069 = vadd.f32 %v1045, 1.0
        %v1070 = vadd.f32 %v1047, 1.0
        %v1071 = vadd.f32 %v1049, 1.0
        %v1072 = vadd.f32 %v1051, 1.0
        %v1073 = vadd.f32 %v1053, 1.0
        %v1074 = vadd.f32 %v1055, 1.0
        %v1075 = vadd.f32 %v1057, 1.0
        %v1076 = vadd.f32 %v1059, 1.0
        %v1077 = vadd.f32 %v1061, 1.0
        %v1078 = vrcp.pop %v1062
        %v1079 = vrcp.pop %v1063
        %v1080 = vrcp.pop %v1064
        %v1081 = vrcp.pop %v1065
        %v1082 = vrcp.pop %v1066
        %v1083 = vrcp.pop %v1067
        %v1084 = vrcp.pop %v1068
        %v1085 = vrcp.pop %v1069
        %v1086 = vrcp.pop %v1070
        %v1087 = vrcp.pop %v1071
        %v1088 = vrcp.pop %v1072
        %v1089 = vrcp.pop %v1073
        %v1090 = vrcp.pop %v1074
        %v1091 = vrcp.pop %v1075
        %v1092 = vrcp.pop %v1076
        %v1093 = vrcp.pop %v1077
        %v1094 = vmul.f32 %v952, %v1078
        %v1095 = vmul.f32 %v955, %v1079
        %v1096 = vmul.f32 %v960, %v1080
        %v1097 = vmul.f32 %v963, %v1081
        %v1098 = vmul.f32 %v968, %v1082
        %v1099 = vmul.f32 %v971, %v1083
        %v1100 = vmul.f32 %v976, %v1084
        %v1101 = vmul.f32 %v979, %v1085
        %v1102 = vmul.f32 %v984, %v1086
        %v1103 = vmul.f32 %v987, %v1087
        %v1104 = vmul.f32 %v992, %v1088
        %v1105 = vmul.f32 %v995, %v1089
        %v1106 = vmul.f32 %v1000, %v1090
        %v1107 = vmul.f32 %v1003, %v1091
        %v1108 = vmul.f32 %v1008, %v1092
        %v1109 = vmul.f32 %v1011, %v1093
        %v1110 = vld [vmem:[%s5] sm:$0xff]
        %v1111 = vld [vmem:[%s6] sm:$0xff]
        %1113 = vset.pattern.permute.xlu0 0
        %1114 = vperm.xlu0 %1113, %v1111
        %v1115 = vpop.permute.xlu0 %1114
        %1117 = vmatprep.subr.mxu0 0.0
        %1118 = vmatpush1.msra.mxu0 %v1109
        %1119 = vmatprep.subr.mxu0 0.0
        %1120 = vmatpush1.msra.mxu0 %v1108
        %1121 = vmatprep.subr.mxu0 0.0
        %1122 = vmatpush1.msra.mxu0 %v1107
        %1123 = vmatprep.subr.mxu0 0.0
        %1124 = vmatpush1.msra.mxu0 %v1106
        %1125 = vmatprep.subr.mxu0 0.0
        %1126 = vmatpush1.msra.mxu0 %v1105
        %1127 = vmatprep.subr.mxu0 0.0
        %1128 = vmatpush1.msra.mxu0 %v1104
        %1129 = vmatprep.subr.mxu0 0.0
        %1130 = vmatpush1.msra.mxu0 %v1103
        %1131 = vmatprep.subr.mxu0 0.0
        %1132 = vmatpush1.msra.mxu0 %v1102
        %1133 = vmatprep.subr.mxu0 0.0
        %1134 = vmatpush1.msra.mxu0 %v1101
        %1135 = vmatprep.subr.mxu0 0.0
        %1136 = vmatpush1.msra.mxu0 %v1100
        %1137 = vmatprep.subr.mxu0 0.0
        %1138 = vmatpush1.msra.mxu0 %v1099
        %1139 = vmatprep.subr.mxu0 0.0
        %1140 = vmatpush1.msra.mxu0 %v1098
        %1141 = vmatprep.subr.mxu0 0.0
        %1142 = vmatpush1.msra.mxu0 %v1097
        %1143 = vmatprep.subr.mxu0 0.0
        %1144 = vmatpush1.msra.mxu0 %v1096
        %1145 = vmatprep.subr.mxu0 0.0
        %1146 = vmatpush1.msra.mxu0 %v1095
        %1147 = vmatprep.subr.mxu0 0.0
        %1148 = vmatpush1.msra.mxu0 %v1094
        %1149 = vmatprep.subr.mxu0 0.0
        %1150 = vmatpush2.msra.mxu0 0.0
        %1151 = vmatprep.subr.mxu0 0.0
        %1152 = vmatpush2.msra.mxu0 0.0
        %1153 = vmatprep.subr.mxu0 0.0
        %1154 = vmatpush2.msra.mxu0 0.0
        %1155 = vmatprep.subr.mxu0 0.0
        %1156 = vmatpush2.msra.mxu0 0.0
        %1157 = vmatprep.subr.mxu0 0.0
        %1158 = vmatpush2.msra.mxu0 0.0
        %1159 = vmatprep.subr.mxu0 0.0
        %1160 = vmatpush2.msra.mxu0 0.0
        %1161 = vmatprep.subr.mxu0 0.0
        %1162 = vmatpush2.msra.mxu0 0.0
        %1163 = vmatprep.subr.mxu0 0.0
        %1164 = vmatpush2.msra.mxu0 0.0
        %1165 = vmatprep.subr.mxu0 0.0
        %1166 = vmatpush2.msra.mxu0 0.0
        %1167 = vmatprep.subr.mxu0 0.0
        %1168 = vmatpush2.msra.mxu0 0.0
        %1169 = vmatprep.subr.mxu0 0.0
        %1170 = vmatpush2.msra.mxu0 0.0
        %1171 = vmatprep.subr.mxu0 0.0
        %1172 = vmatpush2.msra.mxu0 0.0
        %1173 = vmatprep.subr.mxu0 0.0
        %1174 = vmatpush2.msra.mxu0 0.0
        %1175 = vmatprep.subr.mxu0 0.0
        %1176 = vmatpush2.msra.mxu0 0.0
        %1177 = vmatprep.subr.mxu0 0.0
        %1178 = vmatpush2.msra.mxu0 0.0
        %1179 = vmatprep.subr.mxu0 0.0
        %1180 = vmatpush2.msra.mxu0 0.0
        %1181 = vmatprep.mubr.f32.mxu0 0.0
        %1182 = vmatmul.mubr.f32.gmra.mxu0 %v1110
        %v1183 = vpop.f32.mrf.mxu0
        %v1184 = vadd.f32 %v1115, %v1183
        %v1185 = vpop.f32.mrf.mxu0
        %1186 = vdwg.mxu0
        %1187 = vst [vmem:[%s361] sm:$0xff] %v1184
        %p1188 = scmp.lt.s32.totalorder %s20, 2
        %s1189 = scalar_select %p1188, %s20, 2
        %s1190 = smul.addr %s1189, 8
        %s1191 = scalar_lea.vmem %s7, %s1190
        // Predicated region
        $region98: #{a_call__.1} parent=84 // pred_check
          %p1192 = pneg %p190
        $region99: #{a_call__.1} parent=84 // pred_check_branch
          %1194 = sbr.rel (%p1192) target = $region101
        $region100: #{a_call__.1} parent=84 // pred_region
          _
        $region101: #{a_call__.1} parent=84 // pred_fallthru
          _
      $region85: #{a_call__.1} parent=5 // pred_fallthru
        _
      %p1195 = scmp.le.s32.totalorder 2, %s15
      // Predicated region
      $region102: #{a_call__.1} parent=5 // pred_check
        %p1196 = pneg %p1195
      $region103: #{a_call__.1} parent=5 // pred_check_branch
        %1198 = sbr.rel (%p1196) target = $region105
      $region104: #{a_call__.1} parent=5 // pred_region
        %s1199 = ssub.s32 %s15, 2
        // Predicated region
        $region106: #{a_call__.1} parent=104 // pred_check
          %p1200 = pneg %p196
        $region107: #{a_call__.1} parent=104 // pred_check_branch
          %1202 = sbr.rel (%p1200) target = $region109
        $region108: #{a_call__.1} parent=104 // pred_region
          %p1203 = scmp.lt.s32.totalorder %s21, 2
          %s1204 = scalar_select %p1203, %s21, 2
          %s1205 = smul.addr %s1204, 8
          %s1206 = scalar_lea.vmem %s7, %s1205
        $region109: #{a_call__.1} parent=104 // pred_fallthru
          _
      $region105: #{a_call__.1} parent=5 // pred_fallthru
        _
    $region6: #{a_call__.1} parent=1 // loop_footer
      %s19 = sadd.s32 1, %s15
    $region7: #{a_call__.1} parent=1 // loop_footer_branch
      %14 = sbr.rel target = $region3
    $region8: #{a_call__.1} parent=1 // loop_exit
      _
    %1207 = vsyncpa [#allocation4], 1
    %s1208 = scalar_lea.sflag [#allocation4], 1
    %1209 = vsyncpa %s1208, 1
    %1210 = vsyncpa [#allocation6], 1

</llo_original>
